<compile_context>
chip_gen: v5e
topology: v5e:2x2
jax: 0.10.0
libtpu: 0.0.40
codegen_flags: <defaults>
</compile_context>

<pallas_src>
import jax
import jax.numpy as jnp
from jax.experimental import pallas as pl
from jax.experimental.pallas import tpu as pltpu

# Compile-time constant from the module: operator.add(x254, (4, 64))
_RHS = (4, 64)


def _tuple_concat_kernel(lhs_ref, out_ref):
    # lhs_ref: SMEM int32[2], out_ref: SMEM int32[4]
    out_ref[0] = lhs_ref[0]
    out_ref[1] = lhs_ref[1]
    out_ref[2] = _RHS[0]   # baked constants: no rhs input, no extra DMA
    out_ref[3] = _RHS[1]


@jax.jit
def tuple_add_pallas(lhs):
    """Replicates M.forward: operator.add(x254, (4, 64)) for a 2-tuple."""
    # lhs: int32[2]  (the input shape-tuple as a tiny vector)
    return pl.pallas_call(
        _tuple_concat_kernel,
        out_shape=jax.ShapeDtypeStruct((4,), jnp.int32),
        in_specs=[pl.BlockSpec(memory_space=pltpu.SMEM)],
        out_specs=pl.BlockSpec(memory_space=pltpu.SMEM),
    )(lhs)


if __name__ == "__main__":
    # PRNGKey kept for protocol consistency; the module takes no tensor input,
    # only the literal tuple (1, 384).
    _ = jax.random.PRNGKey(0)

    x254 = (1, 384)
    lhs = jnp.asarray(x254, dtype=jnp.int32)          # shape (2,)

    result = tuple_add_pallas(lhs)
    result = jax.block_until_ready(result)

    # Single device->host transfer, then convert to a Python tuple to match
    # the PyTorch return type/semantics.
    x255 = tuple(jax.device_get(result).tolist())
    expected = (1, 384, 4, 64)
    assert x255 == expected, f"mismatch: {x255} vs {expected}"
    print("KERNEL_OK")
</pallas_src>

<mosaic_0001>
module attributes {stable_mosaic.version = 11 : i64} {
  func.func @_tuple_concat_kernel(%arg0: memref<2xi32, #tpu.memory_space<smem>>, %arg1: memref<4xi32, #tpu.memory_space<smem>>) attributes {dimension_semantics = [], scalar_prefetch = 0 : i64, scratch_operands = 0 : i64, tpu.core_type = #tpu.core_type<tc>} {
    %c0 = arith.constant 0 : index
    %0 = memref.load %arg0[%c0] : memref<2xi32, #tpu.memory_space<smem>>
    %c0_0 = arith.constant 0 : index
    %1 = memref.load %arg1[%c0_0] : memref<4xi32, #tpu.memory_space<smem>>
    memref.store %0, %arg1[%c0_0] : memref<4xi32, #tpu.memory_space<smem>>
    %c1 = arith.constant 1 : index
    %2 = memref.load %arg0[%c1] : memref<2xi32, #tpu.memory_space<smem>>
    %c1_1 = arith.constant 1 : index
    %3 = memref.load %arg1[%c1_1] : memref<4xi32, #tpu.memory_space<smem>>
    memref.store %2, %arg1[%c1_1] : memref<4xi32, #tpu.memory_space<smem>>
    %c4_i32 = arith.constant 4 : i32
    %c2 = arith.constant 2 : index
    %4 = memref.load %arg1[%c2] : memref<4xi32, #tpu.memory_space<smem>>
    memref.store %c4_i32, %arg1[%c2] : memref<4xi32, #tpu.memory_space<smem>>
    %c64_i32 = arith.constant 64 : i32
    %c3 = arith.constant 3 : index
    %5 = memref.load %arg1[%c3] : memref<4xi32, #tpu.memory_space<smem>>
    memref.store %c64_i32, %arg1[%c3] : memref<4xi32, #tpu.memory_space<smem>>
    return
  }
}

</mosaic_0001>

<llo_original>
// kernel: tuple_add_pallas.1
$region0: #{tuple_add_pallas.1}
  #allocation0 [shape = 'u32[]', space=smem, size = 0x4, offset = 0x4, fixed_abs, tag = 'smem constant byte address 0x4 - core index']
  #allocation1 [shape = 'u32[72,128]{1,0:T(1,128)}', space=vmem, size = 0x9000, scoped, tag = 'internal scratch']
  %s0 = inlined_call_operand.hbm [shape: s32[2], index: 0, kind: input, shape index: {}]
  %s1 = inlined_call_operand.hbm [shape: s32[4], index: 1, kind: output, shape index: {}]
  %s2 = sld [smem:[#allocation0]]
  $region18: #{tuple_add_pallas.1} parent=0
    _
  %s4 = ssub.s32 1, %s2
  %s5 = scalar_select 0, %s4, %s2
  $region1: #{tuple_add_pallas.1} parent=0
    #allocation2 [shape = 'u8[512]{0}', space=smem, size = 0x200, scoped, tag = 'input window, operand 0, single buffered']
    #allocation3 [shape = 's32[1]{0}', space=sflag, size = 0x4, scoped, tag = 'scoped memory for tuple_add_pallas.1']
    #allocation4 [shape = 's32[1]{0}', space=sflag, size = 0x4, scoped, tag = 'scoped memory for tuple_add_pallas.1']
    #allocation5 [shape = 'u8[512]{0}', space=smem, size = 0x200, scoped, tag = 'output window, operand 0, single buffered']
    %6 = vsyncpa [#allocation3], 0
    %7 = vsyncpa [#allocation4], 0
    // Predicated region
    $region2: #{tuple_add_pallas.1} parent=1 // pred_check
      _
    $region3: #{tuple_add_pallas.1} parent=1 // pred_check_branch
      %9 = sbr.rel (0) target = $region5
    $region4: #{tuple_add_pallas.1} parent=1 // pred_region
      %11 = vsyncadd [#allocation3], 0
      %s13 = sshll.u32 %s0, 4
      %s14 = int_to_ptr.hbm [resolvable:$true] %s13
      %16 = dma.hbm_to_smem %s14, 16, [#allocation2], [#allocation3]
    $region5: #{tuple_add_pallas.1} parent=1 // pred_fallthru
      _
    // Predicated region
    $region6: #{tuple_add_pallas.1} parent=1 // pred_check
      _
    $region7: #{tuple_add_pallas.1} parent=1 // pred_check_branch
      %18 = sbr.rel (0) target = $region9
    $region8: #{tuple_add_pallas.1} parent=1 // pred_region
      %20 = dma.done [#allocation3], 16
    $region9: #{tuple_add_pallas.1} parent=1 // pred_fallthru
      _
    %21 = sfence
    %s22 = sld [smem:[#allocation2]]
    %s23 = scalar_lea.smem [#allocation5], 0
    %24 = sst [smem:[%s23]] %s22
    %s25 = sld [smem:[#allocation2 + $0x1]]
    %s26 = scalar_lea.smem [#allocation5], 1
    %27 = sst [smem:[%s26]] %s25
    %s28 = scalar_lea.smem [#allocation5], 2
    %29 = sst [smem:[%s28]] 4
    %s30 = scalar_lea.smem [#allocation5], 3
    %31 = sst [smem:[%s30]] 64
    // Predicated region
    $region10: #{tuple_add_pallas.1} parent=1 // pred_check
      _
    $region11: #{tuple_add_pallas.1} parent=1 // pred_check_branch
      %33 = sbr.rel (0) target = $region13
    $region12: #{tuple_add_pallas.1} parent=1 // pred_region
      %35 = vsyncadd [#allocation4], 0
      %s37 = sshll.u32 %s1, 4
      %s38 = int_to_ptr.hbm [resolvable:$true] %s37
      %40 = dma.smem_to_hbm [#allocation5], 16, %s38, [#allocation4]
    $region13: #{tuple_add_pallas.1} parent=1 // pred_fallthru
      _
    // Predicated region
    $region14: #{tuple_add_pallas.1} parent=1 // pred_check
      _
    $region15: #{tuple_add_pallas.1} parent=1 // pred_check_branch
      %42 = sbr.rel (0) target = $region17
    $region16: #{tuple_add_pallas.1} parent=1 // pred_region
      %44 = dma.done [#allocation4], 16
    $region17: #{tuple_add_pallas.1} parent=1 // pred_fallthru
      _
    %45 = sfence
    %46 = vsyncpa [#allocation3], 1
    %47 = vsyncpa [#allocation4], 1

</llo_original>
